<compile_context>
chip_gen: v6e
topology: v6e:2x2x1
jax: 0.10.0
libtpu: 0.0.40
codegen_flags: <defaults>
</compile_context>

<pallas_src>
import jax
import jax.numpy as jnp
from jax.experimental import pallas as pl
from jax.experimental.pallas import tpu as pltpu

IN_FEATURES = 256
OUT_FEATURES = 64
TM_MAX = 1024      # double-buffered (TM,256)+(TM,64) f32 tiles ~2.6 MiB: safe everywhere


def _round_up(x, m):
    return (x + m - 1) // m * m


def fused_linear_kernel(x_ref, wt_ref, b_ref, o_ref):
    # v1 = x @ Wt + b ; f32 accumulation on the MXU.
    acc = jnp.dot(x_ref[...], wt_ref[...], preferred_element_type=jnp.float32)
    o_ref[...] = (acc + b_ref[...]).astype(o_ref.dtype)
    # TODO(synk): the original module then computes `v1 + x1`, i.e.
    # (N, 64) + (N, 256); that broadcast is invalid in PyTorch (jit_fail
    # reference), so it has no defined semantics and is not reproduced here.


def prepare_params(w, b):
    """One-time parameter layout: (64,256) torch weight -> (256,64) Wt, (1,64) bias."""
    return jnp.transpose(w), jnp.reshape(b, (1, OUT_FEATURES))


def _pick_tm(n):
    # Big tiles amortize per-step overhead; when the whole batch fits in one
    # max tile, split into >= 2 steps so the "parallel" grid axis can actually
    # use both TensorCores on v7x.  Always a multiple of 8.
    if n > TM_MAX:
        return TM_MAX
    if n >= 16:
        return _round_up((n + 1) // 2, 8)
    return _round_up(max(n, 1), 8)


@jax.jit
def model_forward(x, wt, b2d):
    """x: (N, 256) f32, wt: (256, 64) f32 (pre-transposed), b2d: (1, 64) f32."""
    n = x.shape[0]
    tm = _pick_tm(n)

    cost = pl.CostEstimate(
        flops=2 * n * IN_FEATURES * OUT_FEATURES,
        bytes_accessed=(n * (IN_FEATURES + OUT_FEATURES) * 4
                        + IN_FEATURES * OUT_FEATURES * 4
                        + OUT_FEATURES * 4),
        transcendentals=0,
    )

    return pl.pallas_call(
        fused_linear_kernel,
        out_shape=jax.ShapeDtypeStruct((n, OUT_FEATURES), x.dtype),
        grid=(pl.cdiv(n, tm),),
        in_specs=[
            pl.BlockSpec((tm, IN_FEATURES), lambda i: (i, 0)),            # x tile
            pl.BlockSpec((IN_FEATURES, OUT_FEATURES), lambda i: (0, 0)),  # Wt resident
            pl.BlockSpec((1, OUT_FEATURES), lambda i: (0, 0)),            # bias resident
        ],
        out_specs=pl.BlockSpec((tm, OUT_FEATURES), lambda i: (i, 0)),
        compiler_params=pltpu.CompilerParams(
            dimension_semantics=("parallel",)),  # dual-TC sharding on v7x
        cost_estimate=cost,
    )(x, wt, b2d)


if __name__ == "__main__":
    key = jax.random.PRNGKey(0)
    kx, kw, kb = jax.random.split(key, 3)

    # Input matching the module's intended input x1 = torch.randn(1, 256)
    x = jax.random.normal(kx, (1, IN_FEATURES), dtype=jnp.float32)

    # Deterministic Linear(256, 64) parameters (PyTorch-style uniform init)
    bound = 1.0 / (IN_FEATURES ** 0.5)
    w = jax.random.uniform(kw, (OUT_FEATURES, IN_FEATURES),
                           minval=-bound, maxval=bound, dtype=jnp.float32)
    b = jax.random.uniform(kb, (OUT_FEATURES,),
                           minval=-bound, maxval=bound, dtype=jnp.float32)

    # One-time parameter layout (hoisted out of the forward pass).
    wt, b2d = prepare_params(w, b)

    out = model_forward(x, wt, b2d)
    jax.block_until_ready(out)
    ref = x @ w.T + b
    assert out.shape == (1, OUT_FEATURES)
    assert jnp.allclose(out, ref, atol=1e-5, rtol=1e-5)

    # Also exercise the multi-step / masked-last-block path (n not a multiple of tm).
    x_big = jax.random.normal(kx, (1037, IN_FEATURES), dtype=jnp.float32)
    out_big = model_forward(x_big, wt, b2d)
    jax.block_until_ready(out_big)
    ref_big = x_big @ w.T + b
    assert out_big.shape == (1037, OUT_FEATURES)
    assert jnp.allclose(out_big, ref_big, atol=1e-4, rtol=1e-4)

    print("KERNEL_OK")
</pallas_src>

<mosaic_0001>
module attributes {stable_mosaic.version = 11 : i64} {
  func.func @fused_linear_kernel(%arg0: i32, %arg1: memref<8x256xf32, #tpu.memory_space<vmem>>, %arg2: memref<256x64xf32, #tpu.memory_space<vmem>>, %arg3: memref<1x64xf32, #tpu.memory_space<vmem>>, %arg4: memref<8x64xf32, #tpu.memory_space<vmem>>) attributes {dimension_semantics = [#tpu.dimension_semantics<parallel>], iteration_bounds = array<i64: 1>, scalar_prefetch = 0 : i64, scratch_operands = 0 : i64, tpu.core_type = #tpu.core_type<tc>, window_params = [{transform_indices = @transform_0, window_bounds = array<i64: 8, 256>}, {pipeline_mode = #tpu.pipeline_mode<synchronous>, transform_indices = @transform_1, window_bounds = array<i64: 256, 64>}, {pipeline_mode = #tpu.pipeline_mode<synchronous>, transform_indices = @transform_2, window_bounds = array<i64: 1, 64>}, {transform_indices = @transform_3, window_bounds = array<i64: 8, 64>}]} {
    %c0 = arith.constant 0 : index
    %c0_0 = arith.constant 0 : index
    %0 = vector.load %arg1[%c0, %c0_0] : memref<8x256xf32, #tpu.memory_space<vmem>>, vector<8x256xf32>
    %c0_1 = arith.constant 0 : index
    %c0_2 = arith.constant 0 : index
    %1 = vector.load %arg2[%c0_1, %c0_2] : memref<256x64xf32, #tpu.memory_space<vmem>>, vector<256x64xf32>
    %cst = arith.constant dense<0.000000e+00> : vector<8x64xf32>
    %2 = tpu.matmul %0, %1, %cst {dimension_numbers = #tpu.dot_dimension_numbers<[1], [0], [0], [1], [0, 0, 1, 1], [], []>} : vector<8x256xf32>, vector<256x64xf32>, vector<8x64xf32> -> vector<8x64xf32>
    %c0_3 = arith.constant 0 : index
    %c0_4 = arith.constant 0 : index
    %3 = vector.load %arg3[%c0_3, %c0_4] : memref<1x64xf32, #tpu.memory_space<vmem>>, vector<1x64xf32>
    %4 = vector.broadcast %3 : vector<1x64xf32> to vector<8x64xf32>
    %5 = arith.addf %2, %4 : vector<8x64xf32>
    %c0_5 = arith.constant 0 : index
    %c0_6 = arith.constant 0 : index
    %6 = vector.load %arg4[%c0_5, %c0_6] : memref<8x64xf32, #tpu.memory_space<vmem>>, vector<8x64xf32>
    tpu.vector_store %arg4[%c0_5, %c0_6], %5 {strides = array<i32>} : memref<8x64xf32, #tpu.memory_space<vmem>>, vector<8x64xf32>,
    return
  }
  func.func @transform_0(%arg0: i32) -> (i32, i32) {
    %c0_i32 = arith.constant 0 : i32
    %c0_i32_0 = arith.constant 0 : i32
    return %arg0, %c0_i32 : i32, i32
  }
  func.func @transform_1(%arg0: i32) -> (i32, i32) {
    %c0_i32 = arith.constant 0 : i32
    %c0_i32_0 = arith.constant 0 : i32
    %c0_i32_1 = arith.constant 0 : i32
    return %c0_i32, %c0_i32_0 : i32, i32
  }
  func.func @transform_2(%arg0: i32) -> (i32, i32) {
    %c0_i32 = arith.constant 0 : i32
    %c0_i32_0 = arith.constant 0 : i32
    %c0_i32_1 = arith.constant 0 : i32
    return %c0_i32, %c0_i32_0 : i32, i32
  }
  func.func @transform_3(%arg0: i32) -> (i32, i32) {
    %c0_i32 = arith.constant 0 : i32
    %c0_i32_0 = arith.constant 0 : i32
    return %arg0, %c0_i32 : i32, i32
  }
}

</mosaic_0001>

<llo_original>
// kernel: model_forward.1
$region0: #{model_forward.1}
  #allocation0 [shape = 'u32[]', space=smem, size = 0x4, offset = 0x4, fixed_abs, tag = 'smem constant byte address 0x4 - core index']
  #allocation1 [shape = 'u32[144,128]{1,0:T(1,128)}', space=vmem, size = 0x12000, scoped, tag = 'internal scratch']
  %s0 = inlined_call_operand.vmem [shape: f32[1,256], index: 0, kind: input, shape index: {}]
  %s1 = inlined_call_operand.vmem [shape: f32[256,64], index: 1, kind: input, shape index: {}]
  %s2 = inlined_call_operand.vmem [shape: f32[1,64], index: 2, kind: input, shape index: {}]
  %s3 = inlined_call_operand.hbm [shape: f32[1,64], index: 3, kind: output, shape index: {}]
  %s4 = sld [smem:[#allocation0]]
  $region22: #{model_forward.1} parent=0
    _
  %s6 = ssub.s32 1, %s4
  %s7 = scalar_select 0, %s6, %s4
  $region1: #{model_forward.1} parent=0
    #allocation2 [shape = 'u8[4096]{0}', space=vmem, size = 0x1000, scoped, tag = 'output window, operand 0, single buffered']
    #allocation3 [shape = 's32[1]{0}', space=sflag, size = 0x4, scoped, tag = 'scoped memory for model_forward.1']
    %8 = vsyncpa [#allocation3], 0
    // Predicated region
    $region2: #{model_forward.1} parent=1 // pred_check
      _
    $region3: #{model_forward.1} parent=1 // pred_check_branch
      %10 = sbr.rel (0) target = $region5
    $region4: #{model_forward.1} parent=1 // pred_region
      _
    $region5: #{model_forward.1} parent=1 // pred_fallthru
      _
    // Predicated region
    $region6: #{model_forward.1} parent=1 // pred_check
      _
    $region7: #{model_forward.1} parent=1 // pred_check_branch
      %12 = sbr.rel (0) target = $region9
    $region8: #{model_forward.1} parent=1 // pred_region
      _
    $region9: #{model_forward.1} parent=1 // pred_fallthru
      _
    // Predicated region
    $region10: #{model_forward.1} parent=1 // pred_check
      _
    $region11: #{model_forward.1} parent=1 // pred_check_branch
      %14 = sbr.rel (0) target = $region13
    $region12: #{model_forward.1} parent=1 // pred_region
      _
    $region13: #{model_forward.1} parent=1 // pred_fallthru
      _
    %v15 = vld [vmem:[%s0] sm:$0x3]
    %v16 = vld [vmem:[%s0 + $0x2] sm:$0x3]
    %v17 = vld [vmem:[%s0 + $0x4] sm:$0x3]
    %v18 = vld [vmem:[%s0 + $0x6] sm:$0x3]
    %v19 = vld [vmem:[%s0 + $0x8] sm:$0x3]
    %v20 = vld [vmem:[%s0 + $0xa] sm:$0x3]
    %v21 = vld [vmem:[%s0 + $0xc] sm:$0x3]
    %v22 = vld [vmem:[%s0 + $0xe] sm:$0x3]
    %v23 = vld [vmem:[%s1] sm:$0xff]
    %v24 = vld [vmem:[%s1 + $0x8] sm:$0xff]
    %v25 = vld [vmem:[%s1 + $0x10] sm:$0xff]
    %v26 = vld [vmem:[%s1 + $0x18] sm:$0xff]
    %v27 = vld [vmem:[%s1 + $0x20] sm:$0xff]
    %v28 = vld [vmem:[%s1 + $0x28] sm:$0xff]
    %v29 = vld [vmem:[%s1 + $0x30] sm:$0xff]
    %v30 = vld [vmem:[%s1 + $0x38] sm:$0xff]
    %v31 = vld [vmem:[%s1 + $0x40] sm:$0xff]
    %v32 = vld [vmem:[%s1 + $0x48] sm:$0xff]
    %v33 = vld [vmem:[%s1 + $0x50] sm:$0xff]
    %v34 = vld [vmem:[%s1 + $0x58] sm:$0xff]
    %v35 = vld [vmem:[%s1 + $0x60] sm:$0xff]
    %v36 = vld [vmem:[%s1 + $0x68] sm:$0xff]
    %v37 = vld [vmem:[%s1 + $0x70] sm:$0xff]
    %v38 = vld [vmem:[%s1 + $0x78] sm:$0xff]
    %v39 = vld [vmem:[%s1 + $0x80] sm:$0xff]
    %v40 = vld [vmem:[%s1 + $0x88] sm:$0xff]
    %v41 = vld [vmem:[%s1 + $0x90] sm:$0xff]
    %v42 = vld [vmem:[%s1 + $0x98] sm:$0xff]
    %v43 = vld [vmem:[%s1 + $0xa0] sm:$0xff]
    %v44 = vld [vmem:[%s1 + $0xa8] sm:$0xff]
    %v45 = vld [vmem:[%s1 + $0xb0] sm:$0xff]
    %v46 = vld [vmem:[%s1 + $0xb8] sm:$0xff]
    %v47 = vld [vmem:[%s1 + $0xc0] sm:$0xff]
    %v48 = vld [vmem:[%s1 + $0xc8] sm:$0xff]
    %v49 = vld [vmem:[%s1 + $0xd0] sm:$0xff]
    %v50 = vld [vmem:[%s1 + $0xd8] sm:$0xff]
    %v51 = vld [vmem:[%s1 + $0xe0] sm:$0xff]
    %v52 = vld [vmem:[%s1 + $0xe8] sm:$0xff]
    %v53 = vld [vmem:[%s1 + $0xf0] sm:$0xff]
    %v54 = vld [vmem:[%s1 + $0xf8] sm:$0xff]
    %v55 = vld [vmem:[%s2] sm:$0x1]
    %v57 = vlaneseq
    %v58 = vshrl.u32 %v57, 7
    %v59 = vsub.s32 0, %v58
    %v60 = vrot.slane %v55, %v59
    %v70 = vcombine.low %v15, %v16
    %v71 = vcombine.low %v17, %v18
    %v72 = vcombine.low %v19, %v20
    %v73 = vcombine.low %v21, %v22
    %v75 = vunpack.c.l.s4 1966171168
    %v76 = vunpack.c.0.s8 %v75
    %v77 = vlaneseq
    %v78 = vshrl.u32 %v77, 7
    %v79 = vsub.s32 %v76, %v78
    %v80 = vrot.slane %v70, %v79
    %v82 = vunpack.c.l.s4 1966171168
    %v83 = vunpack.c.0.s8 %v82
    %v84 = vlaneseq
    %v85 = vshrl.u32 %v84, 7
    %v86 = vsub.s32 %v83, %v85
    %v87 = vrot.slane %v71, %v86
    %v89 = vunpack.c.l.s4 1966171168
    %v90 = vunpack.c.0.s8 %v89
    %v91 = vlaneseq
    %v92 = vshrl.u32 %v91, 7
    %v93 = vsub.s32 %v90, %v92
    %v94 = vrot.slane %v72, %v93
    %v96 = vunpack.c.l.s4 1966171168
    %v97 = vunpack.c.0.s8 %v96
    %v98 = vlaneseq
    %v99 = vshrl.u32 %v98, 7
    %v100 = vsub.s32 %v97, %v99
    %v101 = vrot.slane %v73, %v100
    %v102 = vcombine.low %v80, %v87
    %v103 = vcombine.high %v80, %v87
    %v104 = vcombine.low %v94, %v101
    %v105 = vcombine.high %v94, %v101
    %v107 = vunpack.c.l.s4 1966171168
    %v108 = vunpack.c.0.s8 %v107
    %v109 = vlaneseq
    %v110 = vshrl.u32 %v109, 7
    %v111 = vsub.s32 %v108, %v110
    %v112 = vrot.slane %v102, %v111
    %v114 = vunpack.c.l.s4 1966171168
    %v115 = vunpack.c.0.s8 %v114
    %v116 = vlaneseq
    %v117 = vshrl.u32 %v116, 7
    %v118 = vsub.s32 %v115, %v117
    %v119 = vrot.slane %v103, %v118
    %v121 = vunpack.c.l.s4 1966171168
    %v122 = vunpack.c.0.s8 %v121
    %v123 = vlaneseq
    %v124 = vshrl.u32 %v123, 7
    %v125 = vsub.s32 %v122, %v124
    %v126 = vrot.slane %v104, %v125
    %v128 = vunpack.c.l.s4 1966171168
    %v129 = vunpack.c.0.s8 %v128
    %v130 = vlaneseq
    %v131 = vshrl.u32 %v130, 7
    %v132 = vsub.s32 %v129, %v131
    %v133 = vrot.slane %v105, %v132
    %v134 = vcombine.low %v112, %v126
    %v135 = vcombine.low %v119, %v133
    %138 = vmatprep.subr.mxu0 0.0
    %139 = vmatpush1.msra.mxu0 %v38
    %140 = vmatprep.subr.mxu0 0.0
    %141 = vmatpush1.msra.mxu0 %v37
    %142 = vmatprep.subr.mxu0 0.0
    %143 = vmatpush1.msra.mxu0 %v36
    %144 = vmatprep.subr.mxu0 0.0
    %145 = vmatpush1.msra.mxu0 %v35
    %146 = vmatprep.subr.mxu0 0.0
    %147 = vmatpush1.msra.mxu0 %v34
    %148 = vmatprep.subr.mxu0 0.0
    %149 = vmatpush1.msra.mxu0 %v33
    %150 = vmatprep.subr.mxu0 0.0
    %151 = vmatpush1.msra.mxu0 %v32
    %152 = vmatprep.subr.mxu0 0.0
    %153 = vmatpush1.msra.mxu0 %v31
    %154 = vmatprep.subr.mxu0 0.0
    %155 = vmatpush1.msra.mxu0 %v30
    %156 = vmatprep.subr.mxu0 0.0
    %157 = vmatpush1.msra.mxu0 %v29
    %158 = vmatprep.subr.mxu0 0.0
    %159 = vmatpush1.msra.mxu0 %v28
    %160 = vmatprep.subr.mxu0 0.0
    %161 = vmatpush1.msra.mxu0 %v27
    %162 = vmatprep.subr.mxu0 0.0
    %163 = vmatpush1.msra.mxu0 %v26
    %164 = vmatprep.subr.mxu0 0.0
    %165 = vmatpush1.msra.mxu0 %v25
    %166 = vmatprep.subr.mxu0 0.0
    %167 = vmatpush1.msra.mxu0 %v24
    %168 = vmatprep.subr.mxu0 0.0
    %169 = vmatpush1.msra.mxu0 %v23
    %170 = vmatprep.subr.mxu0 0.0
    %171 = vmatpush2.msra.mxu0 %v54
    %172 = vmatprep.subr.mxu0 0.0
    %173 = vmatpush2.msra.mxu0 %v53
    %174 = vmatprep.subr.mxu0 0.0
    %175 = vmatpush2.msra.mxu0 %v52
    %176 = vmatprep.subr.mxu0 0.0
    %177 = vmatpush2.msra.mxu0 %v51
    %178 = vmatprep.subr.mxu0 0.0
    %179 = vmatpush2.msra.mxu0 %v50
    %180 = vmatprep.subr.mxu0 0.0
    %181 = vmatpush2.msra.mxu0 %v49
    %182 = vmatprep.subr.mxu0 0.0
    %183 = vmatpush2.msra.mxu0 %v48
    %184 = vmatprep.subr.mxu0 0.0
    %185 = vmatpush2.msra.mxu0 %v47
    %186 = vmatprep.subr.mxu0 0.0
    %187 = vmatpush2.msra.mxu0 %v46
    %188 = vmatprep.subr.mxu0 0.0
    %189 = vmatpush2.msra.mxu0 %v45
    %190 = vmatprep.subr.mxu0 0.0
    %191 = vmatpush2.msra.mxu0 %v44
    %192 = vmatprep.subr.mxu0 0.0
    %193 = vmatpush2.msra.mxu0 %v43
    %194 = vmatprep.subr.mxu0 0.0
    %195 = vmatpush2.msra.mxu0 %v42
    %196 = vmatprep.subr.mxu0 0.0
    %197 = vmatpush2.msra.mxu0 %v41
    %198 = vmatprep.subr.mxu0 0.0
    %199 = vmatpush2.msra.mxu0 %v40
    %200 = vmatprep.subr.mxu0 0.0
    %201 = vmatpush2.msra.mxu0 %v39
    %202 = vmatprep.mubr.f32.mxu0 %v135
    %203 = vmatmul.mubr.f32.gmra.mxu0 %v134
    %v204 = vpop.f32.mrf.mxu0
    %v205 = vadd.f32 %v60, %v204
    %v206 = vpop.f32.mrf.mxu0
    %207 = vdwg.mxu0
    %vm208 = vcmask 523264
    %209 = vst.msk [vmem:[#allocation2] sm:$0xff] %vm208, %v205
    // Predicated region
    $region14: #{model_forward.1} parent=1 // pred_check
      _
    $region15: #{model_forward.1} parent=1 // pred_check_branch
      %211 = sbr.rel (0) target = $region17
    $region16: #{model_forward.1} parent=1 // pred_region
      %s213 = ssub.s32 128, 16
      %214 = vsyncadd [#allocation3], %s213
      %s215 = sshll.u32 [#allocation2], 4
      %s216 = int_to_ptr.vmem [resolvable:$true] %s215
      %221 = dma.vmem_to_hbm [thread:$0]  %s216, 16, %s3, [#allocation3], 16, 16, 1
    $region17: #{model_forward.1} parent=1 // pred_fallthru
      _
    // Predicated region
    $region18: #{model_forward.1} parent=1 // pred_check
      _
    $region19: #{model_forward.1} parent=1 // pred_check_branch
      %223 = sbr.rel (0) target = $region21
    $region20: #{model_forward.1} parent=1 // pred_region
      %224 = dma.done [#allocation3], 128
    $region21: #{model_forward.1} parent=1 // pred_fallthru
      _
    %225 = vsyncpa [#allocation3], 1

</llo_original>
